<compile_context>
chip_gen: v6e
topology: v6e:2x2x1
jax: 0.10.0
libtpu: 0.0.40
codegen_flags: <defaults>
</compile_context>

<pallas_src>
import functools
import math

import jax
import jax.numpy as jnp
from jax.experimental import pallas as pl
from jax.experimental.pallas import tpu as pltpu

LN_EPS = 1e-5                    # PyTorch nn.LayerNorm default eps
MATMUL_DTYPE = jnp.bfloat16      # MXU operand dtype (accumulation stays f32)


# ---------------------------------------------------------------------------
# Kernel helpers
# ---------------------------------------------------------------------------
def _matmul(x, w):
    """MXU matmul: activations cast to the (pre-cast bf16) weight dtype, f32 acc."""
    return jnp.dot(x.astype(w.dtype), w, preferred_element_type=jnp.float32)


def _bias_relu_layernorm(h, vec):
    """Linear-bias + ReLU + (Dropout = identity in eval) + LayerNorm.

    vec rows: 0 = bias, 1 = LN gamma, 2 = LN beta   (each (1, H), f32).
    Two-pass LN (var = E[(h-mu)^2]) with gamma folded into the rsqrt scale.
    """
    b = vec[0:1, :]
    g = vec[1:2, :]
    beta = vec[2:3, :]
    h = jnp.maximum(h + b, 0.0)
    mu = jnp.mean(h, axis=-1, keepdims=True)
    d = h - mu
    var = jnp.mean(d * d, axis=-1, keepdims=True)
    return d * (g * jax.lax.rsqrt(var + LN_EPS)) + beta


def _head_lane_dense(h, head):
    """out_dim == 1 Linear head producing a lane-dense (1, R) row.

    head: (2, H) packed operand — row 0 = W_out^T, row 1[0] = b_out.
    VPU multiply, then transpose + sublane reduce so the R per-row scalars end
    up along lanes (full-width unmasked store of the output row).
    """
    w = head[0:1, :]                              # (1, H)
    b = head[1:2, 0:1]                            # (1, 1)
    hw = h * w                                    # (R, H)   VPU
    return jnp.sum(hw.T, axis=0, keepdims=True) + b   # (1, R)


# ---------------------------------------------------------------------------
# Fused TDCritic kernel: Q-net (over TB*N rows) + V-net (over TB rows)
# ---------------------------------------------------------------------------
def _td_critic_kernel(num_hidden_q, num_hidden_v, *refs):
    """refs = (state(TB,S), action(TB*N,D),
               Q-net: Ws0, Wa0, vec0, [W_l, vec_l]*, head_q(2,H),
               V-net: Wv0, vecv0,     [W_l, vec_l]*, head_v(2,H),
               q_out(1,TB*N), v_out(1,TB))"""
    idx = 0
    s_ref = refs[idx]; idx += 1                   # (TB, S)
    a_ref = refs[idx]; idx += 1                   # (TB*N, D) pre-flattened
    nq = 2 * num_hidden_q + 2
    nv = 2 * num_hidden_v + 1
    q_net = refs[idx: idx + nq]; idx += nq
    v_net = refs[idx: idx + nv]; idx += nv
    q_ref = refs[idx]                             # (1, TB*N)
    v_ref = refs[idx + 1]                         # (1, TB)

    s = s_ref[...]
    a = a_ref[...]
    tb = s.shape[0]
    n_items = a.shape[0] // tb

    # ----------------------------- Q network ------------------------------
    ws0 = q_net[0][...]                           # (S, H0)  state slice of W0 (bf16)
    wa0 = q_net[1][...]                           # (D, H0)  item  slice of W0 (bf16)
    vec0 = q_net[2][...]                          # (3, H0)  f32
    h0 = ws0.shape[1]

    # state part of the first Linear computed once per batch row, broadcast
    # over the N candidate items (no concat+repeat of the state).
    s_proj = _matmul(s, ws0)                      # (TB, H0)
    a_proj = _matmul(a, wa0)                      # (TB*N, H0)
    h = (a_proj.reshape(tb, n_items, h0)
         + s_proj.reshape(tb, 1, h0)).reshape(tb * n_items, h0)
    h = _bias_relu_layernorm(h, vec0)

    for l in range(1, num_hidden_q):
        h = _bias_relu_layernorm(_matmul(h, q_net[2 * l + 1][...]),
                                 q_net[2 * l + 2][...])

    q_ref[...] = _head_lane_dense(h, q_net[-1][...])

    # ----------------------------- V network ------------------------------
    hv = _bias_relu_layernorm(_matmul(s, v_net[0][...]), v_net[1][...])
    for l in range(1, num_hidden_v):
        hv = _bias_relu_layernorm(_matmul(hv, v_net[2 * l][...]),
                                  v_net[2 * l + 1][...])
    v_ref[...] = _head_lane_dense(hv, v_net[-1][...])


# ---------------------------------------------------------------------------
# Host-side packing / tile selection / wrapper
# ---------------------------------------------------------------------------
def _full_spec(arr):
    """Grid-invariant whole-array block (weights stay resident in VMEM)."""
    zeros = (0,) * arr.ndim
    return pl.BlockSpec(arr.shape, lambda i, z=zeros: z)


def _pack_dnn_operands(params, split_rows=None):
    """Flatten DNN params into kernel operands.

    params: [(W, b, gamma, beta)] * L + [(W_out, b_out)]  (out_dim == 1)
    Weights -> bf16; bias/LN/head -> f32.  Head packed as (2, H):
    row 0 = W_out^T, row 1[0] = b_out.
    """
    ops = []
    for l, (w, b, g, be) in enumerate(params[:-1]):
        wl = w.astype(MATMUL_DTYPE)
        if l == 0 and split_rows is not None:
            ops.append(wl[:split_rows])           # W_s
            ops.append(wl[split_rows:])           # W_a
        else:
            ops.append(wl)
        ops.append(jnp.concatenate([b, g, be], axis=0).astype(jnp.float32))
    w_out, b_out = params[-1]
    h_last = w_out.shape[0]
    head = jnp.concatenate(
        [w_out.T, jnp.pad(b_out, ((0, 0), (0, h_last - 1)))],
        axis=0).astype(jnp.float32)               # (2, H_last)
    ops.append(head)
    return ops


def _l2_regularization(params):
    # TODO(synk): get_regularization() source not provided; assumed to be the
    # sum of mean(p**2) over every parameter of self.net (net2 excluded).
    total = jnp.float32(0.0)
    for group in params:
        for p in group:
            total = total + jnp.mean(jnp.square(p.astype(jnp.float32)))
    return total


def _vmem_limit_bytes():
    """Per-generation VMEM limit (v7x has 64 MiB; v5e/v6e have 128 MiB)."""
    try:
        cap = int(pltpu.get_tpu_info().vmem_capacity_bytes)
    except Exception:
        cap = 64 * 1024 * 1024
    return int(min(cap, 128 * 1024 * 1024) * 3 // 4)


def _choose_batch_tile(B, N, per_row_bytes, fixed_bytes, vmem_budget):
    """Pick the batch tile TB.

    Targets TB*N ~ 512 flattened rows (good MXU M-dim / roofline), TB a
    multiple of 8 and of 128/gcd(N,128) (so TB*N % 128 == 0, lane-dense
    stores), bounded by the VMEM budget, with >= 2 grid steps when B allows
    (v7x dual-TC sharding via dimension_semantics=("parallel",)).
    """
    if B * N <= 256:
        return B                                   # tiny: single full-block step
    align = max(8, 128 // math.gcd(N, 128))
    rup = lambda x: align * -(-x // align)
    tb = rup(-(-512 // N))                         # target rows
    tb = min(tb, rup(B))
    if B > align:                                  # keep >= 2 grid steps
        tb = min(tb, rup(-(-B // 2)))
    while tb > align and fixed_bytes + tb * per_row_bytes > vmem_budget:
        tb -= align
    tb = max(align, tb)
    return B if tb >= B else tb


@jax.jit
def td_critic_forward(state_emb, action_features, net_params, net2_params):
    """TDCritic.forward.

    state_emb:       (B, state_dim)
    action_features: (B, N, item_dim)
    Returns {'q': (B, N), 'reg': scalar, 'v': (B,)}   (torch .squeeze(), B,N>1).
    """
    B, state_dim = state_emb.shape
    _, N, item_dim = action_features.shape
    num_hidden_q = len(net_params) - 1
    num_hidden_v = len(net2_params) - 1
    h_max = max([p[0].shape[1] for p in net_params[:-1]]
                + [p[0].shape[1] for p in net2_params[:-1]])

    q_ops = _pack_dnn_operands(net_params, split_rows=state_dim)
    v_ops = _pack_dnn_operands(net2_params)
    w_ops = q_ops + v_ops

    # VMEM budget model: resident weights (x2 buffers) + per-batch-row cost
    # (double-buffered input tiles, f32 activation temps, bf16 matmul copies,
    # double-buffered outputs).
    vmem_limit = _vmem_limit_bytes()
    fixed_bytes = 2 * sum(o.size * o.dtype.itemsize for o in w_ops)
    per_row_bytes = (8 * state_dim + 8 * N * item_dim
                     + 18 * N * h_max + 8 * (N + 1))
    TB = _choose_batch_tile(B, N, per_row_bytes, fixed_bytes, vmem_limit // 2)

    num_tiles = pl.cdiv(B, TB)
    B_pad = num_tiles * TB
    if B_pad != B:
        # Zero-pad so the last tile never reads past the batch edge.
        state_in = jnp.pad(state_emb, ((0, B_pad - B), (0, 0)))
        action_in = jnp.pad(action_features, ((0, B_pad - B), (0, 0), (0, 0)))
    else:
        state_in, action_in = state_emb, action_features
    action_flat = action_in.reshape(B_pad * N, item_dim)   # flatten on HBM side

    in_specs = [
        pl.BlockSpec((TB, state_dim), lambda i: (i, 0)),
        pl.BlockSpec((TB * N, item_dim), lambda i: (i, 0)),
    ] + [_full_spec(op) for op in w_ops]

    out_specs = (
        pl.BlockSpec((1, TB * N), lambda i: (i, 0)),   # lane-dense q row
        pl.BlockSpec((1, TB), lambda i: (i, 0)),       # lane-dense v row
    )

    q_tiles, v_tiles = pl.pallas_call(
        functools.partial(_td_critic_kernel, num_hidden_q, num_hidden_v),
        grid=(num_tiles,),
        in_specs=in_specs,
        out_specs=out_specs,
        out_shape=(jax.ShapeDtypeStruct((num_tiles, TB * N), jnp.float32),
                   jax.ShapeDtypeStruct((num_tiles, TB), jnp.float32)),
        compiler_params=pltpu.CompilerParams(
            dimension_semantics=("parallel",),
            vmem_limit_bytes=vmem_limit),
    )(state_in, action_flat, *w_ops)

    q = q_tiles.reshape(B_pad, N)[:B]
    v = v_tiles.reshape(B_pad)[:B]
    reg = _l2_regularization(net_params)      # get_regularization(self.net) only
    return {'q': q, 'reg': reg, 'v': v}


# ---------------------------------------------------------------------------
# Parameter init (mirrors nn.Linear / nn.LayerNorm defaults) + pure-JAX ref
# ---------------------------------------------------------------------------
def init_dnn_params(key, in_dim, hidden_dims, out_dim=1):
    params = []
    d = in_dim
    for h in hidden_dims:
        key, kw, kb = jax.random.split(key, 3)
        bound = 1.0 / jnp.sqrt(d)
        w = jax.random.uniform(kw, (d, h), jnp.float32, -bound, bound)
        b = jax.random.uniform(kb, (1, h), jnp.float32, -bound, bound)
        params.append((w, b, jnp.ones((1, h), jnp.float32),
                       jnp.zeros((1, h), jnp.float32)))
        d = h
    key, kw, kb = jax.random.split(key, 3)
    bound = 1.0 / jnp.sqrt(d)
    w_out = jax.random.uniform(kw, (d, out_dim), jnp.float32, -bound, bound)
    b_out = jax.random.uniform(kb, (1, out_dim), jnp.float32, -bound, bound)
    params.append((w_out, b_out))
    return params


def _dnn_reference(x, params):
    h = x
    for (w, b, g, be) in params[:-1]:
        h = jnp.maximum(jnp.dot(h, w) + b, 0.0)
        mu = jnp.mean(h, axis=-1, keepdims=True)
        var = jnp.mean((h - mu) ** 2, axis=-1, keepdims=True)
        h = (h - mu) / jnp.sqrt(var + LN_EPS) * g + be
    w_out, b_out = params[-1]
    return jnp.dot(h, w_out) + b_out


def _reference_forward(state_emb, action_features, net_params, net2_params):
    B, S = state_emb.shape
    _, N, D = action_features.shape
    x = jnp.concatenate(
        [jnp.broadcast_to(state_emb[:, None, :], (B, N, S)), action_features],
        axis=-1).reshape(B * N, S + D)
    return {'q': _dnn_reference(x, net_params).reshape(B, N),
            'reg': _l2_regularization(net_params),
            'v': _dnn_reference(state_emb, net2_params).reshape(B)}


if __name__ == "__main__":
    # Shapes consistent with the module defaults:
    #   B=2, N=8 candidate actions, state_dim=32, item_dim=32, hidden=[128]
    B, N = 2, 8
    state_dim, item_dim = 32, 32
    hidden_dims = [128]

    key = jax.random.PRNGKey(0)
    k_state, k_act, k_net, k_net2 = jax.random.split(key, 4)

    state_emb = jax.random.normal(k_state, (B, state_dim), jnp.float32)
    action_features = jax.random.normal(k_act, (B, N, item_dim), jnp.float32)

    net_params = init_dnn_params(k_net, state_dim + item_dim, hidden_dims, 1)
    net2_params = init_dnn_params(k_net2, state_dim, hidden_dims, 1)

    out = td_critic_forward(state_emb, action_features, net_params, net2_params)
    jax.block_until_ready(out)

    assert out['q'].shape == (B, N)
    assert out['v'].shape == (B,)
    assert out['reg'].shape == ()

    ref = _reference_forward(state_emb, action_features, net_params, net2_params)
    # bf16 MXU operands with f32 accumulation -> loose tolerance vs f32 reference.
    assert jnp.allclose(out['q'], ref['q'], atol=5e-2, rtol=5e-2)
    assert jnp.allclose(out['v'], ref['v'], atol=5e-2, rtol=5e-2)
    assert jnp.allclose(out['reg'], ref['reg'], atol=1e-5, rtol=1e-5)

    print("KERNEL_OK")
</pallas_src>

<mosaic_0001>
module attributes {stable_mosaic.version = 11 : i64} {
  func.func @_td_critic_kernel(%arg0: i32, %arg1: memref<2x32xf32, #tpu.memory_space<vmem>>, %arg2: memref<16x32xf32, #tpu.memory_space<vmem>>, %arg3: memref<32x128xbf16, #tpu.memory_space<vmem>>, %arg4: memref<32x128xbf16, #tpu.memory_space<vmem>>, %arg5: memref<3x128xf32, #tpu.memory_space<vmem>>, %arg6: memref<2x128xf32, #tpu.memory_space<vmem>>, %arg7: memref<32x128xbf16, #tpu.memory_space<vmem>>, %arg8: memref<3x128xf32, #tpu.memory_space<vmem>>, %arg9: memref<2x128xf32, #tpu.memory_space<vmem>>, %arg10: memref<1x16xf32, #tpu.memory_space<vmem>>, %arg11: memref<1x2xf32, #tpu.memory_space<vmem>>) attributes {dimension_semantics = [#tpu.dimension_semantics<parallel>], iteration_bounds = array<i64: 1>, scalar_prefetch = 0 : i64, scratch_operands = 0 : i64, tpu.core_type = #tpu.core_type<tc>, window_params = [{transform_indices = @transform_0, window_bounds = array<i64: 2, 32>}, {transform_indices = @transform_1, window_bounds = array<i64: 16, 32>}, {pipeline_mode = #tpu.pipeline_mode<synchronous>, transform_indices = @transform_2, window_bounds = array<i64: 32, 128>}, {pipeline_mode = #tpu.pipeline_mode<synchronous>, transform_indices = @transform_3, window_bounds = array<i64: 32, 128>}, {pipeline_mode = #tpu.pipeline_mode<synchronous>, transform_indices = @transform_4, window_bounds = array<i64: 3, 128>}, {pipeline_mode = #tpu.pipeline_mode<synchronous>, transform_indices = @transform_5, window_bounds = array<i64: 2, 128>}, {pipeline_mode = #tpu.pipeline_mode<synchronous>, transform_indices = @transform_6, window_bounds = array<i64: 32, 128>}, {pipeline_mode = #tpu.pipeline_mode<synchronous>, transform_indices = @transform_7, window_bounds = array<i64: 3, 128>}, {pipeline_mode = #tpu.pipeline_mode<synchronous>, transform_indices = @transform_8, window_bounds = array<i64: 2, 128>}, {transform_indices = @transform_9, window_bounds = array<i64: 1, 16>}, {transform_indices = @transform_10, window_bounds = array<i64: 1, 2>}]} {
    %c0 = arith.constant 0 : index
    %c0_0 = arith.constant 0 : index
    %0 = vector.load %arg1[%c0, %c0_0] : memref<2x32xf32, #tpu.memory_space<vmem>>, vector<2x32xf32>
    %c0_1 = arith.constant 0 : index
    %c0_2 = arith.constant 0 : index
    %1 = vector.load %arg2[%c0_1, %c0_2] : memref<16x32xf32, #tpu.memory_space<vmem>>, vector<16x32xf32>
    %c0_3 = arith.constant 0 : index
    %c0_4 = arith.constant 0 : index
    %2 = vector.load %arg3[%c0_3, %c0_4] : memref<32x128xbf16, #tpu.memory_space<vmem>>, vector<32x128xbf16>
    %c0_5 = arith.constant 0 : index
    %c0_6 = arith.constant 0 : index
    %3 = vector.load %arg4[%c0_5, %c0_6] : memref<32x128xbf16, #tpu.memory_space<vmem>>, vector<32x128xbf16>
    %c0_7 = arith.constant 0 : index
    %c0_8 = arith.constant 0 : index
    %4 = vector.load %arg5[%c0_7, %c0_8] : memref<3x128xf32, #tpu.memory_space<vmem>>, vector<3x128xf32>
    %5 = arith.truncf %0 : vector<2x32xf32> to vector<2x32xbf16>
    %cst = arith.constant dense<0.000000e+00> : vector<2x128xf32>
    %6 = tpu.matmul %5, %2, %cst {dimension_numbers = #tpu.dot_dimension_numbers<[1], [0], [0], [1], [0, 0, 1, 1], [], []>} : vector<2x32xbf16>, vector<32x128xbf16>, vector<2x128xf32> -> vector<2x128xf32>
    %7 = arith.truncf %1 : vector<16x32xf32> to vector<16x32xbf16>
    %cst_9 = arith.constant dense<0.000000e+00> : vector<16x128xf32>
    %8 = tpu.matmul %7, %3, %cst_9 {dimension_numbers = #tpu.dot_dimension_numbers<[1], [0], [0], [1], [0, 0, 1, 1], [], []>} : vector<16x32xbf16>, vector<32x128xbf16>, vector<16x128xf32> -> vector<16x128xf32>
    %9 = vector.shape_cast %8 : vector<16x128xf32> to vector<2x8x128xf32>
    %10 = vector.shape_cast %6 : vector<2x128xf32> to vector<2x1x128xf32>
    %11 = vector.broadcast %10 : vector<2x1x128xf32> to vector<2x8x128xf32>
    %12 = arith.addf %9, %11 : vector<2x8x128xf32>
    %13 = vector.shape_cast %12 : vector<2x8x128xf32> to vector<16x128xf32>
    %14 = vector.extract_strided_slice %4 {offsets = [0, 0], sizes = [1, 128], strides = [1, 1]} : vector<3x128xf32> to vector<1x128xf32>
    %15 = vector.extract_strided_slice %4 {offsets = [1, 0], sizes = [1, 128], strides = [1, 1]} : vector<3x128xf32> to vector<1x128xf32>
    %16 = vector.extract_strided_slice %4 {offsets = [2, 0], sizes = [1, 128], strides = [1, 1]} : vector<3x128xf32> to vector<1x128xf32>
    %17 = vector.broadcast %14 : vector<1x128xf32> to vector<16x128xf32>
    %18 = arith.addf %13, %17 : vector<16x128xf32>
    %cst_10 = arith.constant 0.000000e+00 : f32
    %19 = vector.broadcast %cst_10 : f32 to vector<16x128xf32>
    %20 = arith.maximumf %18, %19 : vector<16x128xf32>
    %cst_11 = arith.constant dense<0.000000e+00> : vector<16xf32>
    %21 = vector.multi_reduction <add>, %20, %cst_11 [1] : vector<16x128xf32> to vector<16xf32>
    %22 = vector.shape_cast %21 : vector<16xf32> to vector<16x1xf32>
    %cst_12 = arith.constant 1.280000e+02 : f32
    %23 = vector.broadcast %cst_12 : f32 to vector<16x1xf32>
    %24 = arith.divf %22, %23 : vector<16x1xf32>
    %25 = vector.broadcast %24 : vector<16x1xf32> to vector<16x128xf32>
    %26 = arith.subf %20, %25 : vector<16x128xf32>
    %27 = arith.mulf %26, %26 : vector<16x128xf32>
    %cst_13 = arith.constant dense<0.000000e+00> : vector<16xf32>
    %28 = vector.multi_reduction <add>, %27, %cst_13 [1] : vector<16x128xf32> to vector<16xf32>
    %29 = vector.shape_cast %28 : vector<16xf32> to vector<16x1xf32>
    %cst_14 = arith.constant 1.280000e+02 : f32
    %30 = vector.broadcast %cst_14 : f32 to vector<16x1xf32>
    %31 = arith.divf %29, %30 : vector<16x1xf32>
    %cst_15 = arith.constant 9.99999974E-6 : f32
    %32 = vector.broadcast %cst_15 : f32 to vector<16x1xf32>
    %33 = arith.addf %31, %32 : vector<16x1xf32>
    %34 = math.rsqrt %33 : vector<16x1xf32>
    %35 = vector.broadcast %15 : vector<1x128xf32> to vector<16x128xf32>
    %36 = vector.broadcast %34 : vector<16x1xf32> to vector<16x128xf32>
    %37 = arith.mulf %35, %36 : vector<16x128xf32>
    %38 = arith.mulf %26, %37 : vector<16x128xf32>
    %39 = vector.broadcast %16 : vector<1x128xf32> to vector<16x128xf32>
    %40 = arith.addf %38, %39 : vector<16x128xf32>
    %c0_16 = arith.constant 0 : index
    %c0_17 = arith.constant 0 : index
    %41 = vector.load %arg6[%c0_16, %c0_17] : memref<2x128xf32, #tpu.memory_space<vmem>>, vector<2x128xf32>
    %42 = vector.extract_strided_slice %41 {offsets = [0, 0], sizes = [1, 128], strides = [1, 1]} : vector<2x128xf32> to vector<1x128xf32>
    %43 = vector.extract_strided_slice %41 {offsets = [1, 0], sizes = [1, 1], strides = [1, 1]} : vector<2x128xf32> to vector<1x1xf32>
    %44 = vector.broadcast %42 : vector<1x128xf32> to vector<16x128xf32>
    %45 = arith.mulf %40, %44 : vector<16x128xf32>
    %46 = tpu.transpose %45, [1, 0] : vector<16x128xf32> -> vector<128x16xf32>
    %cst_18 = arith.constant dense<0.000000e+00> : vector<16xf32>
    %47 = vector.multi_reduction <add>, %46, %cst_18 [0] : vector<128x16xf32> to vector<16xf32>
    %48 = vector.shape_cast %47 : vector<16xf32> to vector<1x16xf32>
    %49 = vector.broadcast %43 : vector<1x1xf32> to vector<1x16xf32>
    %50 = arith.addf %48, %49 : vector<1x16xf32>
    %c0_19 = arith.constant 0 : index
    %c0_20 = arith.constant 0 : index
    %51 = vector.load %arg10[%c0_19, %c0_20] : memref<1x16xf32, #tpu.memory_space<vmem>>, vector<1x16xf32>
    tpu.vector_store %arg10[%c0_19, %c0_20], %50 {strides = array<i32>} : memref<1x16xf32, #tpu.memory_space<vmem>>, vector<1x16xf32>,
    %c0_21 = arith.constant 0 : index
    %c0_22 = arith.constant 0 : index
    %52 = vector.load %arg7[%c0_21, %c0_22] : memref<32x128xbf16, #tpu.memory_space<vmem>>, vector<32x128xbf16>
    %53 = arith.truncf %0 : vector<2x32xf32> to vector<2x32xbf16>
    %cst_23 = arith.constant dense<0.000000e+00> : vector<2x128xf32>
    %54 = tpu.matmul %53, %52, %cst_23 {dimension_numbers = #tpu.dot_dimension_numbers<[1], [0], [0], [1], [0, 0, 1, 1], [], []>} : vector<2x32xbf16>, vector<32x128xbf16>, vector<2x128xf32> -> vector<2x128xf32>
    %c0_24 = arith.constant 0 : index
    %c0_25 = arith.constant 0 : index
    %55 = vector.load %arg8[%c0_24, %c0_25] : memref<3x128xf32, #tpu.memory_space<vmem>>, vector<3x128xf32>
    %56 = vector.extract_strided_slice %55 {offsets = [0, 0], sizes = [1, 128], strides = [1, 1]} : vector<3x128xf32> to vector<1x128xf32>
    %57 = vector.extract_strided_slice %55 {offsets = [1, 0], sizes = [1, 128], strides = [1, 1]} : vector<3x128xf32> to vector<1x128xf32>
    %58 = vector.extract_strided_slice %55 {offsets = [2, 0], sizes = [1, 128], strides = [1, 1]} : vector<3x128xf32> to vector<1x128xf32>
    %59 = vector.broadcast %56 : vector<1x128xf32> to vector<2x128xf32>
    %60 = arith.addf %54, %59 : vector<2x128xf32>
    %cst_26 = arith.constant 0.000000e+00 : f32
    %61 = vector.broadcast %cst_26 : f32 to vector<2x128xf32>
    %62 = arith.maximumf %60, %61 : vector<2x128xf32>
    %cst_27 = arith.constant dense<0.000000e+00> : vector<2xf32>
    %63 = vector.multi_reduction <add>, %62, %cst_27 [1] : vector<2x128xf32> to vector<2xf32>
    %64 = vector.shape_cast %63 : vector<2xf32> to vector<2x1xf32>
    %cst_28 = arith.constant 1.280000e+02 : f32
    %65 = vector.broadcast %cst_28 : f32 to vector<2x1xf32>
    %66 = arith.divf %64, %65 : vector<2x1xf32>
    %67 = vector.broadcast %66 : vector<2x1xf32> to vector<2x128xf32>
    %68 = arith.subf %62, %67 : vector<2x128xf32>
    %69 = arith.mulf %68, %68 : vector<2x128xf32>
    %cst_29 = arith.constant dense<0.000000e+00> : vector<2xf32>
    %70 = vector.multi_reduction <add>, %69, %cst_29 [1] : vector<2x128xf32> to vector<2xf32>
    %71 = vector.shape_cast %70 : vector<2xf32> to vector<2x1xf32>
    %cst_30 = arith.constant 1.280000e+02 : f32
    %72 = vector.broadcast %cst_30 : f32 to vector<2x1xf32>
    %73 = arith.divf %71, %72 : vector<2x1xf32>
    %cst_31 = arith.constant 9.99999974E-6 : f32
    %74 = vector.broadcast %cst_31 : f32 to vector<2x1xf32>
    %75 = arith.addf %73, %74 : vector<2x1xf32>
    %76 = math.rsqrt %75 : vector<2x1xf32>
    %77 = vector.broadcast %57 : vector<1x128xf32> to vector<2x128xf32>
    %78 = vector.broadcast %76 : vector<2x1xf32> to vector<2x128xf32>
    %79 = arith.mulf %77, %78 : vector<2x128xf32>
    %80 = arith.mulf %68, %79 : vector<2x128xf32>
    %81 = vector.broadcast %58 : vector<1x128xf32> to vector<2x128xf32>
    %82 = arith.addf %80, %81 : vector<2x128xf32>
    %c0_32 = arith.constant 0 : index
    %c0_33 = arith.constant 0 : index
    %83 = vector.load %arg9[%c0_32, %c0_33] : memref<2x128xf32, #tpu.memory_space<vmem>>, vector<2x128xf32>
    %84 = vector.extract_strided_slice %83 {offsets = [0, 0], sizes = [1, 128], strides = [1, 1]} : vector<2x128xf32> to vector<1x128xf32>
    %85 = vector.extract_strided_slice %83 {offsets = [1, 0], sizes = [1, 1], strides = [1, 1]} : vector<2x128xf32> to vector<1x1xf32>
    %86 = vector.broadcast %84 : vector<1x128xf32> to vector<2x128xf32>
    %87 = arith.mulf %82, %86 : vector<2x128xf32>
    %88 = tpu.transpose %87, [1, 0] : vector<2x128xf32> -> vector<128x2xf32>
    %cst_34 = arith.constant dense<0.000000e+00> : vector<2xf32>
    %89 = vector.multi_reduction <add>, %88, %cst_34 [0] : vector<128x2xf32> to vector<2xf32>
    %90 = vector.shape_cast %89 : vector<2xf32> to vector<1x2xf32>
    %91 = vector.broadcast %85 : vector<1x1xf32> to vector<1x2xf32>
    %92 = arith.addf %90, %91 : vector<1x2xf32>
    %c0_35 = arith.constant 0 : index
    %c0_36 = arith.constant 0 : index
    %93 = vector.load %arg11[%c0_35, %c0_36] : memref<1x2xf32, #tpu.memory_space<vmem>>, vector<1x2xf32>
    tpu.vector_store %arg11[%c0_35, %c0_36], %92 {strides = array<i32>} : memref<1x2xf32, #tpu.memory_space<vmem>>, vector<1x2xf32>,
    return
  }
  func.func @transform_0(%arg0: i32) -> (i32, i32) {
    %c0_i32 = arith.constant 0 : i32
    %c0_i32_0 = arith.constant 0 : i32
    return %arg0, %c0_i32 : i32, i32
  }
  func.func @transform_1(%arg0: i32) -> (i32, i32) {
    %c0_i32 = arith.constant 0 : i32
    %c0_i32_0 = arith.constant 0 : i32
    return %arg0, %c0_i32 : i32, i32
  }
  func.func @transform_2(%arg0: i32) -> (i32, i32) {
    %c0_i32 = arith.constant 0 : i32
    %c0_i32_0 = arith.constant 0 : i32
    %c0_i32_1 = arith.constant 0 : i32
    return %c0_i32, %c0_i32_0 : i32, i32
  }
  func.func @transform_3(%arg0: i32) -> (i32, i32) {
    %c0_i32 = arith.constant 0 : i32
    %c0_i32_0 = arith.constant 0 : i32
    %c0_i32_1 = arith.constant 0 : i32
    return %c0_i32, %c0_i32_0 : i32, i32
  }
  func.func @transform_4(%arg0: i32) -> (i32, i32) {
    %c0_i32 = arith.constant 0 : i32
    %c0_i32_0 = arith.constant 0 : i32
    %c0_i32_1 = arith.constant 0 : i32
    return %c0_i32, %c0_i32_0 : i32, i32
  }
  func.func @transform_5(%arg0: i32) -> (i32, i32) {
    %c0_i32 = arith.constant 0 : i32
    %c0_i32_0 = arith.constant 0 : i32
    %c0_i32_1 = arith.constant 0 : i32
    return %c0_i32, %c0_i32_0 : i32, i32
  }
  func.func @transform_6(%arg0: i32) -> (i32, i32) {
    %c0_i32 = arith.constant 0 : i32
    %c0_i32_0 = arith.constant 0 : i32
    %c0_i32_1 = arith.constant 0 : i32
    return %c0_i32, %c0_i32_0 : i32, i32
  }
  func.func @transform_7(%arg0: i32) -> (i32, i32) {
    %c0_i32 = arith.constant 0 : i32
    %c0_i32_0 = arith.constant 0 : i32
    %c0_i32_1 = arith.constant 0 : i32
    return %c0_i32, %c0_i32_0 : i32, i32
  }
  func.func @transform_8(%arg0: i32) -> (i32, i32) {
    %c0_i32 = arith.constant 0 : i32
    %c0_i32_0 = arith.constant 0 : i32
    %c0_i32_1 = arith.constant 0 : i32
    return %c0_i32, %c0_i32_0 : i32, i32
  }
  func.func @transform_9(%arg0: i32) -> (i32, i32) {
    %c0_i32 = arith.constant 0 : i32
    %c0_i32_0 = arith.constant 0 : i32
    return %arg0, %c0_i32 : i32, i32
  }
  func.func @transform_10(%arg0: i32) -> (i32, i32) {
    %c0_i32 = arith.constant 0 : i32
    %c0_i32_0 = arith.constant 0 : i32
    return %arg0, %c0_i32 : i32, i32
  }
}

</mosaic_0001>

<llo_original>
// kernel: td_critic_forward.1
$region0: #{td_critic_forward.1}
  #allocation0 [shape = 'u32[]', space=smem, size = 0x4, offset = 0x4, fixed_abs, tag = 'smem constant byte address 0x4 - core index']
  #allocation1 [shape = 'u32[144,128]{1,0:T(1,128)}', space=vmem, size = 0x12000, scoped, tag = 'internal scratch']
  %s0 = inlined_call_operand.vmem [shape: f32[2,32], index: 0, kind: input, shape index: {}]
  %s1 = inlined_call_operand.vmem [shape: f32[16,32], index: 1, kind: input, shape index: {}]
  %s2 = inlined_call_operand.vmem [shape: bf16[32,128], index: 2, kind: input, shape index: {}]
  %s3 = inlined_call_operand.vmem [shape: bf16[32,128], index: 3, kind: input, shape index: {}]
  %s4 = inlined_call_operand.vmem [shape: f32[3,128], index: 4, kind: input, shape index: {}]
  %s5 = inlined_call_operand.vmem [shape: f32[2,128], index: 5, kind: input, shape index: {}]
  %s6 = inlined_call_operand.vmem [shape: bf16[32,128], index: 6, kind: input, shape index: {}]
  %s7 = inlined_call_operand.vmem [shape: f32[3,128], index: 7, kind: input, shape index: {}]
  %s8 = inlined_call_operand.vmem [shape: f32[2,128], index: 8, kind: input, shape index: {}]
  %s9 = inlined_call_operand.vmem [shape: f32[1,16], index: 9, kind: output, shape index: {0}]
  %s10 = inlined_call_operand.hbm [shape: f32[1,2], index: 10, kind: output, shape index: {1}]
  %11 = xla_tuple %s9, %s10
  %s12 = sld [smem:[#allocation0]]
  $region54: #{td_critic_forward.1} parent=0
    _
  %s14 = ssub.s32 1, %s12
  %s15 = scalar_select 0, %s14, %s12
  $region1: #{td_critic_forward.1} parent=0
    #allocation2 [shape = 'u8[512]{0}', space=vmem, size = 0x400, scoped, tag = 'output window, operand 1, single buffered']
    #allocation3 [shape = 's32[1]{0}', space=sflag, size = 0x4, scoped, tag = 'scoped memory for td_critic_forward.1']
    %16 = vsyncpa [#allocation3], 0
    // Predicated region
    $region2: #{td_critic_forward.1} parent=1 // pred_check
      _
    $region3: #{td_critic_forward.1} parent=1 // pred_check_branch
      %18 = sbr.rel (0) target = $region5
    $region4: #{td_critic_forward.1} parent=1 // pred_region
      _
    $region5: #{td_critic_forward.1} parent=1 // pred_fallthru
      _
    // Predicated region
    $region6: #{td_critic_forward.1} parent=1 // pred_check
      _
    $region7: #{td_critic_forward.1} parent=1 // pred_check_branch
      %20 = sbr.rel (0) target = $region9
    $region8: #{td_critic_forward.1} parent=1 // pred_region
      _
    $region9: #{td_critic_forward.1} parent=1 // pred_fallthru
      _
    // Predicated region
    $region10: #{td_critic_forward.1} parent=1 // pred_check
      _
    $region11: #{td_critic_forward.1} parent=1 // pred_check_branch
      %22 = sbr.rel (0) target = $region13
    $region12: #{td_critic_forward.1} parent=1 // pred_region
      _
    $region13: #{td_critic_forward.1} parent=1 // pred_fallthru
      _
    // Predicated region
    $region14: #{td_critic_forward.1} parent=1 // pred_check
      _
    $region15: #{td_critic_forward.1} parent=1 // pred_check_branch
      %24 = sbr.rel (0) target = $region17
    $region16: #{td_critic_forward.1} parent=1 // pred_region
      _
    $region17: #{td_critic_forward.1} parent=1 // pred_fallthru
      _
    // Predicated region
    $region18: #{td_critic_forward.1} parent=1 // pred_check
      _
    $region19: #{td_critic_forward.1} parent=1 // pred_check_branch
      %26 = sbr.rel (0) target = $region21
    $region20: #{td_critic_forward.1} parent=1 // pred_region
      _
    $region21: #{td_critic_forward.1} parent=1 // pred_fallthru
      _
    // Predicated region
    $region22: #{td_critic_forward.1} parent=1 // pred_check
      _
    $region23: #{td_critic_forward.1} parent=1 // pred_check_branch
      %28 = sbr.rel (0) target = $region25
    $region24: #{td_critic_forward.1} parent=1 // pred_region
      _
    $region25: #{td_critic_forward.1} parent=1 // pred_fallthru
      _
    // Predicated region
    $region26: #{td_critic_forward.1} parent=1 // pred_check
      _
    $region27: #{td_critic_forward.1} parent=1 // pred_check_branch
      %30 = sbr.rel (0) target = $region29
    $region28: #{td_critic_forward.1} parent=1 // pred_region
      _
    $region29: #{td_critic_forward.1} parent=1 // pred_fallthru
      _
    // Predicated region
    $region30: #{td_critic_forward.1} parent=1 // pred_check
      _
    $region31: #{td_critic_forward.1} parent=1 // pred_check_branch
      %32 = sbr.rel (0) target = $region33
    $region32: #{td_critic_forward.1} parent=1 // pred_region
      _
    $region33: #{td_critic_forward.1} parent=1 // pred_fallthru
      _
    // Predicated region
    $region34: #{td_critic_forward.1} parent=1 // pred_check
      _
    $region35: #{td_critic_forward.1} parent=1 // pred_check_branch
      %34 = sbr.rel (0) target = $region37
    $region36: #{td_critic_forward.1} parent=1 // pred_region
      _
    $region37: #{td_critic_forward.1} parent=1 // pred_fallthru
      _
    %v36 = vld [vmem:[%s0] sm:$0x3]
    %v37 = vld [vmem:[%s1] sm:$0xff]
    %v38 = vld [vmem:[%s1 + $0x8] sm:$0xff]
    %v39 = vld [vmem:[%s2] sm:$0xf]
    %v40 = vld [vmem:[%s2 + $0x4] sm:$0xf]
    %v41 = vld [vmem:[%s2 + $0x8] sm:$0xf]
    %v42 = vld [vmem:[%s2 + $0xc] sm:$0xf]
    %v43 = vld [vmem:[%s3] sm:$0xf]
    %v44 = vld [vmem:[%s3 + $0x4] sm:$0xf]
    %v45 = vld [vmem:[%s3 + $0x8] sm:$0xf]
    %v46 = vld [vmem:[%s3 + $0xc] sm:$0xf]
    %v47 = vld [vmem:[%s4] sm:$0x7]
    %v48 = vpack.c.bf16 %v36, %v36
    %v53 = vunpack.c.l.b16 %v39
    %v54 = vunpack.c.l.b16 %v40
    %v55 = vunpack.c.l.b16 %v41
    %v56 = vunpack.c.l.b16 %v42
    %v57 = vpack.c.b16 %v54, %v53
    %v58 = vpack.c.b16 %v56, %v55
    %vm61 = vcmask 261120
    %v63 = vsel %vm61, %v48, 0
    %65 = vmatprep.subr.bf16.mxu0 0
    %66 = vmatpush1.bf16.msra.mxu0 0
    %67 = vmatprep.subr.bf16.mxu0 0
    %68 = vmatpush1.bf16.msra.mxu0 0
    %69 = vmatprep.subr.bf16.mxu0 0
    %70 = vmatpush1.bf16.msra.mxu0 0
    %71 = vmatprep.subr.bf16.mxu0 0
    %72 = vmatpush1.bf16.msra.mxu0 0
    %73 = vmatprep.subr.bf16.mxu0 0
    %74 = vmatpush1.bf16.msra.mxu0 0
    %75 = vmatprep.subr.bf16.mxu0 0
    %76 = vmatpush1.bf16.msra.mxu0 0
    %77 = vmatprep.subr.bf16.mxu0 0
    %78 = vmatpush1.bf16.msra.mxu0 %v58
    %79 = vmatprep.subr.bf16.mxu0 0
    %80 = vmatpush1.bf16.msra.mxu0 %v57
    %81 = vmatprep.subr.bf16.mxu0 0
    %82 = vmatpush2.bf16.msra.mxu0 0
    %83 = vmatprep.subr.bf16.mxu0 0
    %84 = vmatpush2.bf16.msra.mxu0 0
    %85 = vmatprep.subr.bf16.mxu0 0
    %86 = vmatpush2.bf16.msra.mxu0 0
    %87 = vmatprep.subr.bf16.mxu0 0
    %88 = vmatpush2.bf16.msra.mxu0 0
    %89 = vmatprep.subr.bf16.mxu0 0
    %90 = vmatpush2.bf16.msra.mxu0 0
    %91 = vmatprep.subr.bf16.mxu0 0
    %92 = vmatpush2.bf16.msra.mxu0 0
    %93 = vmatprep.subr.bf16.mxu0 0
    %94 = vmatpush2.bf16.msra.mxu0 0
    %95 = vmatprep.subr.bf16.mxu0 0
    %96 = vmatpush2.bf16.msra.mxu0 0
    %97 = vmatprep.mubr.bf16.mxu0 0
    %98 = vmatmul.mubr.bf16.gmra.mxu0 %v63
    %v99 = vpop.f32.mrf.mxu0
    %v100 = vadd.f32 0.0, %v99
    %v101 = vpop.f32.mrf.mxu0
    %v102 = vpop.f32.mrf.mxu0
    %v103 = vpop.f32.mrf.mxu0
    %104 = vdwg.mxu0
    %v105 = vpack.c.bf16 %v38, %v37
    %v110 = vunpack.c.l.b16 %v43
    %v111 = vunpack.c.l.b16 %v44
    %v112 = vunpack.c.l.b16 %v45
    %v113 = vunpack.c.l.b16 %v46
    %v114 = vpack.c.b16 %v111, %v110
    %v115 = vpack.c.b16 %v113, %v112
    %v119 = vsel %vm61, %v105, 0
    %121 = vmatprep.subr.bf16.mxu0 0
    %122 = vmatpush1.bf16.msra.mxu0 0
    %123 = vmatprep.subr.bf16.mxu0 0
    %124 = vmatpush1.bf16.msra.mxu0 0
    %125 = vmatprep.subr.bf16.mxu0 0
    %126 = vmatpush1.bf16.msra.mxu0 0
    %127 = vmatprep.subr.bf16.mxu0 0
    %128 = vmatpush1.bf16.msra.mxu0 0
    %129 = vmatprep.subr.bf16.mxu0 0
    %130 = vmatpush1.bf16.msra.mxu0 0
    %131 = vmatprep.subr.bf16.mxu0 0
    %132 = vmatpush1.bf16.msra.mxu0 0
    %133 = vmatprep.subr.bf16.mxu0 0
    %134 = vmatpush1.bf16.msra.mxu0 %v115
    %135 = vmatprep.subr.bf16.mxu0 0
    %136 = vmatpush1.bf16.msra.mxu0 %v114
    %137 = vmatprep.subr.bf16.mxu0 0
    %138 = vmatpush2.bf16.msra.mxu0 0
    %139 = vmatprep.subr.bf16.mxu0 0
    %140 = vmatpush2.bf16.msra.mxu0 0
    %141 = vmatprep.subr.bf16.mxu0 0
    %142 = vmatpush2.bf16.msra.mxu0 0
    %143 = vmatprep.subr.bf16.mxu0 0
    %144 = vmatpush2.bf16.msra.mxu0 0
    %145 = vmatprep.subr.bf16.mxu0 0
    %146 = vmatpush2.bf16.msra.mxu0 0
    %147 = vmatprep.subr.bf16.mxu0 0
    %148 = vmatpush2.bf16.msra.mxu0 0
    %149 = vmatprep.subr.bf16.mxu0 0
    %150 = vmatpush2.bf16.msra.mxu0 0
    %151 = vmatprep.subr.bf16.mxu0 0
    %152 = vmatpush2.bf16.msra.mxu0 0
    %153 = vmatprep.mubr.bf16.mxu0 0
    %154 = vmatmul.mubr.bf16.gmra.mxu0 %v119
    %v155 = vpop.f32.mrf.mxu0
    %v156 = vadd.f32 0.0, %v155
    %v157 = vpop.f32.mrf.mxu0
    %v158 = vpop.f32.mrf.mxu0
    %v159 = vadd.f32 0.0, %v158
    %v160 = vpop.f32.mrf.mxu0
    %161 = vdwg.mxu0
    %v164 = vunpack.c.l.s4 1966171168
    %v165 = vunpack.c.0.s8 %v164
    %v166 = vlaneseq
    %v167 = vshrl.u32 %v166, 7
    %v168 = vsub.s32 %v165, %v167
    %v169 = vrot.slane %v100, %v168
    %v170 = vcombine.high %v169, %v169
    %v172 = vunpack.c.l.s4 1966171168
    %v173 = vunpack.c.0.s8 %v172
    %v174 = vlaneseq
    %v175 = vshrl.u32 %v174, 7
    %v176 = vsub.s32 %v173, %v175
    %v177 = vrot.slane %v169, %v176
    %v179 = vunpack.c.l.s4 1966171168
    %v180 = vunpack.c.0.s8 %v179
    %v181 = vlaneseq
    %v182 = vshrl.u32 %v181, 7
    %v183 = vsub.s32 %v180, %v182
    %v184 = vrot.slane %v170, %v183
    %v185 = vlaneseq
    %v186 = vshrl.u32 %v185, 7
    %v187 = vsub.s32 0, %v186
    %v188 = vrot.slane %v177, %v187
    %v189 = vlaneseq
    %v190 = vshrl.u32 %v189, 7
    %v191 = vsub.s32 0, %v190
    %v192 = vrot.slane %v184, %v191
    %v195 = vadd.f32 %v156, %v188
    %v196 = vadd.f32 %v159, %v192
    %v197 = vlaneseq
    %v198 = vshrl.u32 %v197, 7
    %v199 = vsub.s32 0, %v198
    %v200 = vrot.slane %v47, %v199
    %v201 = vadd.f32 %v195, %v200
    %v202 = vadd.f32 %v196, %v200
    %v203 = vmax.f32 %v201, 0.0
    %v204 = vmax.f32 %v202, 0.0
    %205 = vadd.xlane.f32.xlu0 %v203
    %v206 = vpop.xlane.xlu0 %205
    %207 = vadd.xlane.f32.xlu0 %v204
    %v208 = vpop.xlane.xlu0 %207
    %v209 = vrcp.pop 128.0
    %v210 = vmul.f32 %v206, %v209
    %v211 = vmul.f32 %v208, %v209
    %v212 = vsub.f32 %v203, %v210
    %v213 = vsub.f32 %v204, %v211
    %v214 = vmul.f32 %v212, %v212
    %v215 = vmul.f32 %v213, %v213
    %216 = vadd.xlane.f32.xlu0 %v214
    %v217 = vpop.xlane.xlu0 %216
    %218 = vadd.xlane.f32.xlu0 %v215
    %v219 = vpop.xlane.xlu0 %218
    %v220 = vmul.f32 %v217, %v209
    %v221 = vmul.f32 %v219, %v209
    %v222 = vadd.f32 %v220, 1e-05
    %v223 = vadd.f32 %v221, 1e-05
    %v224 = vrsqrt.pop %v222
    %v225 = vrsqrt.pop %v223
    %v226 = vlaneseq
    %v227 = vshrl.u32 %v226, 7
    %v228 = vsub.s32 1, %v227
    %v229 = vrot.slane %v47, %v228
    %v230 = vmul.f32 %v229, %v224
    %v231 = vmul.f32 %v229, %v225
    %v232 = vmul.f32 %v212, %v230
    %v233 = vmul.f32 %v213, %v231
    %v234 = vlaneseq
    %v235 = vshrl.u32 %v234, 7
    %v236 = vsub.s32 2, %v235
    %v237 = vrot.slane %v47, %v236
    %v238 = vadd.f32 %v232, %v237
    %v239 = vadd.f32 %v233, %v237
    %v240 = vld [vmem:[%s5] sm:$0x3]
    %v241 = vlaneseq
    %v242 = vshrl.u32 %v241, 7
    %v243 = vsub.s32 0, %v242
    %v244 = vrot.slane %v240, %v243
    %v245 = vmul.f32 %v238, %v244
    %v246 = vmul.f32 %v239, %v244
    %247 = vxpose.xlu0.b32.start [1/16] %v245, 128
    %248 = vxpose.xlu0.b32.cont [2/16] %v246, 128
    %249 = vxpose.xlu0.b32.cont [3/16] 0.0, 128
    %250 = vxpose.xlu0.b32.cont [4/16] 0.0, 128
    %251 = vxpose.xlu0.b32.cont [5/16] 0.0, 128
    %252 = vxpose.xlu0.b32.cont [6/16] 0.0, 128
    %253 = vxpose.xlu0.b32.cont [7/16] 0.0, 128
    %254 = vxpose.xlu0.b32.cont [8/16] 0.0, 128
    %255 = vxpose.xlu0.b32.cont [9/16] 0.0, 128
    %256 = vxpose.xlu0.b32.cont [10/16] 0.0, 128
    %257 = vxpose.xlu0.b32.cont [11/16] 0.0, 128
    %258 = vxpose.xlu0.b32.cont [12/16] 0.0, 128
    %259 = vxpose.xlu0.b32.cont [13/16] 0.0, 128
    %260 = vxpose.xlu0.b32.cont [14/16] 0.0, 128
    %261 = vxpose.xlu0.b32.cont [15/16] 0.0, 128
    %262 = vxpose.xlu0.b32.end [16/16] 0.0, 128
    %v263 = vpop.trf.xlu0
    %v264 = vpop.trf.xlu0
    %v265 = vpop.trf.xlu0
    %v266 = vpop.trf.xlu0
    %v267 = vpop.trf.xlu0
    %v268 = vpop.trf.xlu0
    %v269 = vpop.trf.xlu0
    %v270 = vpop.trf.xlu0
    %v271 = vpop.trf.xlu0
    %v272 = vpop.trf.xlu0
    %v273 = vpop.trf.xlu0
    %v274 = vpop.trf.xlu0
    %v275 = vpop.trf.xlu0
    %v276 = vpop.trf.xlu0
    %v277 = vpop.trf.xlu0
    %v278 = vpop.trf.xlu0
    %vm279 = vcmask 130048
    %v280 = vsel %vm279, %v263, 0.0
    %v281 = vsel %vm279, %v264, 0.0
    %v282 = vadd.f32 %v280, %v281
    %v283 = vsel %vm279, %v265, 0.0
    %v284 = vadd.f32 %v282, %v283
    %v285 = vsel %vm279, %v266, 0.0
    %v286 = vadd.f32 %v284, %v285
    %v287 = vsel %vm279, %v267, 0.0
    %v288 = vadd.f32 %v286, %v287
    %v289 = vsel %vm279, %v268, 0.0
    %v290 = vadd.f32 %v288, %v289
    %v291 = vsel %vm279, %v269, 0.0
    %v292 = vadd.f32 %v290, %v291
    %v293 = vsel %vm279, %v270, 0.0
    %v294 = vadd.f32 %v292, %v293
    %v295 = vsel %vm279, %v271, 0.0
    %v296 = vadd.f32 %v294, %v295
    %v297 = vsel %vm279, %v272, 0.0
    %v298 = vadd.f32 %v296, %v297
    %v299 = vsel %vm279, %v273, 0.0
    %v300 = vadd.f32 %v298, %v299
    %v301 = vsel %vm279, %v274, 0.0
    %v302 = vadd.f32 %v300, %v301
    %v303 = vsel %vm279, %v275, 0.0
    %v304 = vadd.f32 %v302, %v303
    %v305 = vsel %vm279, %v276, 0.0
    %v306 = vadd.f32 %v304, %v305
    %v307 = vsel %vm279, %v277, 0.0
    %v308 = vadd.f32 %v306, %v307
    %v309 = vsel %vm279, %v278, 0.0
    %v310 = vadd.f32 %v308, %v309
    %v311 = vrot.slane %v310, 4
    %v312 = vadd.f32 %v310, %v311
    %v313 = vrot.slane %v312, 2
    %v314 = vadd.f32 %v312, %v313
    %v315 = vrot.slane %v314, 1
    %v316 = vadd.f32 %v314, %v315
    %318 = vset.pattern.permute.xlu0 0
    %319 = vperm.xlu0 %318, %v240
    %v320 = vpop.permute.xlu0 %319
    %v322 = vadd.f32 %v316, %v320
    %vm323 = vcmask 123905
    %324 = vst.msk [vmem:[%s9 - $0x1] sm:$0x2] %vm323, %v322
    %v325 = vld [vmem:[%s6] sm:$0xf]
    %v326 = vld [vmem:[%s6 + $0x4] sm:$0xf]
    %v327 = vld [vmem:[%s6 + $0x8] sm:$0xf]
    %v328 = vld [vmem:[%s6 + $0xc] sm:$0xf]
    %v329 = vld [vmem:[%s7] sm:$0x7]
    %v330 = vlaneseq
    %v331 = vshrl.u32 %v330, 7
    %v332 = vsub.s32 0, %v331
    %v333 = vrot.slane %v329, %v332
    %v338 = vunpack.c.l.b16 %v325
    %v339 = vunpack.c.l.b16 %v326
    %v340 = vunpack.c.l.b16 %v327
    %v341 = vunpack.c.l.b16 %v328
    %v342 = vpack.c.b16 %v339, %v338
    %v343 = vpack.c.b16 %v341, %v340
    %346 = vmatprep.subr.bf16.mxu0 0
    %347 = vmatpush1.bf16.msra.mxu0 0
    %348 = vmatprep.subr.bf16.mxu0 0
    %349 = vmatpush1.bf16.msra.mxu0 0
    %350 = vmatprep.subr.bf16.mxu0 0
    %351 = vmatpush1.bf16.msra.mxu0 0
    %352 = vmatprep.subr.bf16.mxu0 0
    %353 = vmatpush1.bf16.msra.mxu0 0
    %354 = vmatprep.subr.bf16.mxu0 0
    %355 = vmatpush1.bf16.msra.mxu0 0
    %356 = vmatprep.subr.bf16.mxu0 0
    %357 = vmatpush1.bf16.msra.mxu0 0
    %358 = vmatprep.subr.bf16.mxu0 0
    %359 = vmatpush1.bf16.msra.mxu0 %v343
    %360 = vmatprep.subr.bf16.mxu0 0
    %361 = vmatpush1.bf16.msra.mxu0 %v342
    %362 = vmatprep.subr.bf16.mxu0 0
    %363 = vmatpush2.bf16.msra.mxu0 0
    %364 = vmatprep.subr.bf16.mxu0 0
    %365 = vmatpush2.bf16.msra.mxu0 0
    %366 = vmatprep.subr.bf16.mxu0 0
    %367 = vmatpush2.bf16.msra.mxu0 0
    %368 = vmatprep.subr.bf16.mxu0 0
    %369 = vmatpush2.bf16.msra.mxu0 0
    %370 = vmatprep.subr.bf16.mxu0 0
    %371 = vmatpush2.bf16.msra.mxu0 0
    %372 = vmatprep.subr.bf16.mxu0 0
    %373 = vmatpush2.bf16.msra.mxu0 0
    %374 = vmatprep.subr.bf16.mxu0 0
    %375 = vmatpush2.bf16.msra.mxu0 0
    %376 = vmatprep.subr.bf16.mxu0 0
    %377 = vmatpush2.bf16.msra.mxu0 0
    %378 = vmatprep.mubr.bf16.mxu0 0
    %379 = vmatmul.mubr.bf16.gmra.mxu0 %v63
    %v380 = vpop.f32.mrf.mxu0
    %v381 = vadd.f32 %v333, %v380
    %v382 = vpop.f32.mrf.mxu0
    %v383 = vpop.f32.mrf.mxu0
    %v384 = vpop.f32.mrf.mxu0
    %385 = vdwg.mxu0
    %v386 = vmax.f32 %v381, 0.0
    %vm387 = vcmask 1041408
    %v388 = vsel %vm387, %v386, 0.0
    %389 = vadd.xlane.f32.xlu0 %v388
    %v390 = vpop.xlane.xlu0 %389
    %v391 = vmul.f32 %v390, %v209
    %v392 = vsub.f32 %v386, %v391
    %v393 = vmul.f32 %v392, %v392
    %v394 = vsel %vm387, %v393, 0.0
    %395 = vadd.xlane.f32.xlu0 %v394
    %v396 = vpop.xlane.xlu0 %395
    %v397 = vmul.f32 %v396, %v209
    %v398 = vadd.f32 %v397, 1e-05
    %v399 = vrsqrt.pop %v398
    %v400 = vlaneseq
    %v401 = vshrl.u32 %v400, 7
    %v402 = vsub.s32 1, %v401
    %v403 = vrot.slane %v329, %v402
    %v404 = vmul.f32 %v403, %v399
    %v405 = vmul.f32 %v392, %v404
    %v406 = vlaneseq
    %v407 = vshrl.u32 %v406, 7
    %v408 = vsub.s32 2, %v407
    %v409 = vrot.slane %v329, %v408
    %v410 = vadd.f32 %v405, %v409
    %v411 = vld [vmem:[%s8] sm:$0x3]
    %v412 = vlaneseq
    %v413 = vshrl.u32 %v412, 7
    %v414 = vsub.s32 0, %v413
    %v415 = vrot.slane %v411, %v414
    %v416 = vmul.f32 %v410, %v415
    %417 = vxpose.xlu0.b32.start [1/16] %v416, 128
    %418 = vxpose.xlu0.b32.cont [2/16] 0.0, 128
    %419 = vxpose.xlu0.b32.cont [3/16] 0.0, 128
    %420 = vxpose.xlu0.b32.cont [4/16] 0.0, 128
    %421 = vxpose.xlu0.b32.cont [5/16] 0.0, 128
    %422 = vxpose.xlu0.b32.cont [6/16] 0.0, 128
    %423 = vxpose.xlu0.b32.cont [7/16] 0.0, 128
    %424 = vxpose.xlu0.b32.cont [8/16] 0.0, 128
    %425 = vxpose.xlu0.b32.cont [9/16] 0.0, 128
    %426 = vxpose.xlu0.b32.cont [10/16] 0.0, 128
    %427 = vxpose.xlu0.b32.cont [11/16] 0.0, 128
    %428 = vxpose.xlu0.b32.cont [12/16] 0.0, 128
    %429 = vxpose.xlu0.b32.cont [13/16] 0.0, 128
    %430 = vxpose.xlu0.b32.cont [14/16] 0.0, 128
    %431 = vxpose.xlu0.b32.cont [15/16] 0.0, 128
    %432 = vxpose.xlu0.b32.end [16/16] 0.0, 128
    %v433 = vpop.trf.xlu0
    %v434 = vpop.trf.xlu0
    %v435 = vpop.trf.xlu0
    %v436 = vpop.trf.xlu0
    %v437 = vpop.trf.xlu0
    %v438 = vpop.trf.xlu0
    %v439 = vpop.trf.xlu0
    %v440 = vpop.trf.xlu0
    %v441 = vpop.trf.xlu0
    %v442 = vpop.trf.xlu0
    %v443 = vpop.trf.xlu0
    %v444 = vpop.trf.xlu0
    %v445 = vpop.trf.xlu0
    %v446 = vpop.trf.xlu0
    %v447 = vpop.trf.xlu0
    %v448 = vpop.trf.xlu0
    %vm449 = vcmask 15360
    %v450 = vsel %vm449, %v433, 0.0
    %v451 = vsel %vm449, %v434, 0.0
    %v452 = vadd.f32 %v450, %v451
    %v453 = vsel %vm449, %v435, 0.0
    %v454 = vadd.f32 %v452, %v453
    %v455 = vsel %vm449, %v436, 0.0
    %v456 = vadd.f32 %v454, %v455
    %v457 = vsel %vm449, %v437, 0.0
    %v458 = vadd.f32 %v456, %v457
    %v459 = vsel %vm449, %v438, 0.0
    %v460 = vadd.f32 %v458, %v459
    %v461 = vsel %vm449, %v439, 0.0
    %v462 = vadd.f32 %v460, %v461
    %v463 = vsel %vm449, %v440, 0.0
    %v464 = vadd.f32 %v462, %v463
    %v465 = vsel %vm449, %v441, 0.0
    %v466 = vadd.f32 %v464, %v465
    %v467 = vsel %vm449, %v442, 0.0
    %v468 = vadd.f32 %v466, %v467
    %v469 = vsel %vm449, %v443, 0.0
    %v470 = vadd.f32 %v468, %v469
    %v471 = vsel %vm449, %v444, 0.0
    %v472 = vadd.f32 %v470, %v471
    %v473 = vsel %vm449, %v445, 0.0
    %v474 = vadd.f32 %v472, %v473
    %v475 = vsel %vm449, %v446, 0.0
    %v476 = vadd.f32 %v474, %v475
    %v477 = vsel %vm449, %v447, 0.0
    %v478 = vadd.f32 %v476, %v477
    %v479 = vsel %vm449, %v448, 0.0
    %v480 = vadd.f32 %v478, %v479
    %v481 = vrot.slane %v480, 4
    %v482 = vadd.f32 %v480, %v481
    %v483 = vrot.slane %v482, 2
    %v484 = vadd.f32 %v482, %v483
    %v485 = vrot.slane %v484, 1
    %v486 = vadd.f32 %v484, %v485
    %488 = vset.pattern.permute.xlu0 0
    %489 = vperm.xlu0 %488, %v411
    %v490 = vpop.permute.xlu0 %489
    %v492 = vadd.f32 %v486, %v490
    %vm493 = vcmask 9217
    %494 = vst.msk [vmem:[#allocation2 - $0x1] sm:$0x2] %vm493, %v492
    // Predicated region
    $region38: #{td_critic_forward.1} parent=1 // pred_check
      _
    $region39: #{td_critic_forward.1} parent=1 // pred_check_branch
      %496 = sbr.rel (0) target = $region41
    $region40: #{td_critic_forward.1} parent=1 // pred_region
      _
    $region41: #{td_critic_forward.1} parent=1 // pred_fallthru
      _
    // Predicated region
    $region42: #{td_critic_forward.1} parent=1 // pred_check
      _
    $region43: #{td_critic_forward.1} parent=1 // pred_check_branch
      %498 = sbr.rel (0) target = $region45
    $region44: #{td_critic_forward.1} parent=1 // pred_region
      %s500 = ssub.s32 16, 16
      %501 = vsyncadd [#allocation3], %s500
      %s503 = sshll.u32 [#allocation2], 4
      %s504 = int_to_ptr.vmem [resolvable:$true] %s503
      %506 = dma.vmem_to_hbm [thread:$0]  %s504, 16, %s10, [#allocation3]
    $region45: #{td_critic_forward.1} parent=1 // pred_fallthru
      _
    // Predicated region
    $region46: #{td_critic_forward.1} parent=1 // pred_check
      _
    $region47: #{td_critic_forward.1} parent=1 // pred_check_branch
      %508 = sbr.rel (0) target = $region49
    $region48: #{td_critic_forward.1} parent=1 // pred_region
      _
    $region49: #{td_critic_forward.1} parent=1 // pred_fallthru
      _
    // Predicated region
    $region50: #{td_critic_forward.1} parent=1 // pred_check
      _
    $region51: #{td_critic_forward.1} parent=1 // pred_check_branch
      %510 = sbr.rel (0) target = $region53
    $region52: #{td_critic_forward.1} parent=1 // pred_region
      %511 = dma.done [#allocation3], 16
    $region53: #{td_critic_forward.1} parent=1 // pred_fallthru
      _
    %512 = vsyncpa [#allocation3], 1

</llo_original>
